<compile_context>
chip_gen: v7x
topology: tpu7x:2x2x1
jax: 0.10.0
libtpu: 0.0.40
codegen_flags: <defaults>
</compile_context>

<pallas_src>
import functools

import numpy as np

import jax
import jax.numpy as jnp
from jax import lax
from jax.experimental import pallas as pl
from jax.experimental.pallas import tpu as pltpu


# ---------------------------------------------------------------------------
# Kernel
# ---------------------------------------------------------------------------
def features_kernel(patches_ref, filters_ref, pool_ref, out_ref):
    """One batch-block per grid step (leading block dim squeezed by BlockSpec).

    patches_ref : (K+1, TB*P)     im2col'ed patches (K-major) + ones row (bias)
    filters_ref : (C,   K+1)      filters/std with folded-normalization bias col
    pool_ref    : (TB*P, TB*OUT)  static block-diagonal AvgPool2d matrix
    out_ref     : (C,   TB*OUT)   pooled activations (f32), lane-dense slab
    """
    # (C, K+1) @ (K+1, TB*P) -> (C, TB*P)  -- MXU, bias included via ones row.
    acts = jnp.dot(filters_ref[...], patches_ref[...],
                   preferred_element_type=jnp.float32)
    # ReLU on the f32 accumulator (VPU), cast back to the MXU operand dtype.
    acts = jnp.maximum(acts, 0.0).astype(pool_ref.dtype)
    # AvgPool2d for all TB images as one MXU matmul; single lane-dense store.
    out_ref[...] = jnp.dot(acts, pool_ref[...],
                           preferred_element_type=jnp.float32)


# ---------------------------------------------------------------------------
# Static (trace-time) tables: im2col gather indices + pooling matrix
# ---------------------------------------------------------------------------
def _build_static_tables(h, w, patch_size, patch_stride, pool_size, pool_stride):
    xs = (h - patch_size) // patch_stride + 1
    ys = (w - patch_size) // patch_stride + 1
    num_patches = xs * ys
    k_size = patch_size * patch_size

    # idx_t[k, p] = flat index into the (h*w) image of element k of patch p,
    # patches in row-major (i, j) order, patch elements row-major
    # (matches FeaturesGenerator.get_patch().flatten()).
    idx = np.empty((num_patches, k_size), dtype=np.int64)
    p = 0
    for i in range(xs):
        for j in range(ys):
            rr = i * patch_stride + np.arange(patch_size)
            cc = j * patch_stride + np.arange(patch_size)
            idx[p] = (rr[:, None] * w + cc[None, :]).reshape(-1)
            p += 1
    idx_t = np.ascontiguousarray(idx.T)                     # (K, P)

    # AvgPool2d(kernel=pool_size, stride=pool_stride) over the (xs, ys) grid
    # expressed as pooled = acts(C, P) @ pool_t(P, out_hw).
    out_h = (xs - pool_size) // pool_stride + 1
    out_w = (ys - pool_size) // pool_stride + 1
    pool_t = np.zeros((num_patches, out_h * out_w), dtype=np.float32)
    inv_win = 1.0 / float(pool_size * pool_size)
    for px in range(out_h):
        for py in range(out_w):
            q = px * out_w + py
            for di in range(pool_size):
                for dj in range(pool_size):
                    r = (px * pool_stride + di) * ys + (py * pool_stride + dj)
                    pool_t[r, q] = inv_win
    return idx_t, pool_t, xs, ys, out_h, out_w


# ---------------------------------------------------------------------------
# Wrappers
# ---------------------------------------------------------------------------
@functools.partial(
    jax.jit,
    static_argnames=("patch_size", "patch_stride", "pool_size", "pool_stride",
                     "patch_mean", "patch_std", "tb", "compute_dtype"))
def features_generator_forward_batched(imgs, filters, *, patch_size, patch_stride,
                                       pool_size, pool_stride,
                                       patch_mean=0.0, patch_std=1.0,
                                       tb=16, compute_dtype=jnp.bfloat16):
    """imgs: (B, H, W) -> (B, C*out_h*out_w), channel-major per image."""
    imgs = jnp.asarray(imgs, jnp.float32)
    b_size, h, w = imgs.shape
    hw = h * w

    idx_t, pool_t, _, _, out_h, out_w = _build_static_tables(
        h, w, patch_size, patch_stride, pool_size, pool_stride)
    k_size, num_patches = idx_t.shape
    out_hw = out_h * out_w

    filters_f = jnp.asarray(filters, jnp.float32)
    c_size = filters_f.shape[0]

    # Pad the batch to a multiple of the per-step batch block TB.
    nblocks = -(-b_size // tb)
    b_pad = nblocks * tb
    if b_pad != b_size:
        imgs = jnp.pad(imgs, ((0, b_pad - b_size), (0, 0), (0, 0)))

    # --- batch-folded im2col: ONE gather, columns ordered (b_local, p) ------
    idx2 = (np.arange(tb, dtype=np.int64)[:, None, None] * hw
            + idx_t[None, :, :])                              # (TB, K, P)
    idx2 = idx2.transpose(1, 0, 2).reshape(k_size, tb * num_patches)
    idx2 = jnp.asarray(idx2.reshape(-1).astype(np.int32))

    imgs_blocked = imgs.reshape(nblocks, tb * hw)
    patches = jnp.take(imgs_blocked, idx2, axis=1)
    patches = patches.reshape(nblocks, k_size, tb * num_patches)
    # Ones row -> bias folded into the matmul contraction (K -> K+1).
    ones_row = jnp.ones((nblocks, 1, tb * num_patches), jnp.float32)
    patches = jnp.concatenate([patches, ones_row], axis=1).astype(compute_dtype)

    # --- fold (x - mean) / std into the weights (trace-time constants) ------
    inv_std = 1.0 / float(patch_std)
    filters_scaled = filters_f * inv_std                                 # (C, K)
    bias = (-float(patch_mean) * inv_std) * jnp.sum(
        filters_f, axis=1, keepdims=True)                                # (C, 1)
    filters_aug = jnp.concatenate(
        [filters_scaled, bias], axis=1).astype(compute_dtype)            # (C, K+1)

    # --- block-diagonal AvgPool matrix for TB images per step ---------------
    pool_big = np.kron(np.eye(tb, dtype=np.float32), pool_t)  # (TB*P, TB*OUT)
    pool_big = jnp.asarray(pool_big, compute_dtype)

    lanes_in = tb * num_patches
    lanes_out = tb * out_hw

    pooled = pl.pallas_call(
        features_kernel,
        out_shape=jax.ShapeDtypeStruct((nblocks, c_size, lanes_out), jnp.float32),
        grid=(nblocks,),
        in_specs=[
            pl.BlockSpec((None, k_size + 1, lanes_in), lambda nb: (nb, 0, 0)),
            pl.BlockSpec((c_size, k_size + 1), lambda nb: (0, 0)),
            pl.BlockSpec((lanes_in, lanes_out), lambda nb: (0, 0)),
        ],
        out_specs=pl.BlockSpec((None, c_size, lanes_out), lambda nb: (nb, 0, 0)),
        compiler_params=pltpu.CompilerParams(
            dimension_semantics=("parallel",),
            vmem_limit_bytes=32 * 1024 * 1024),
    )(patches, filters_aug, pool_big)

    # (nblocks, C, TB*OUT) -> (B, C*OUT): pure layout plumbing in the wrapper.
    pooled = pooled.reshape(nblocks, c_size, tb, out_hw)
    pooled = jnp.transpose(pooled, (0, 2, 1, 3)).reshape(b_pad, c_size * out_hw)
    return pooled[:b_size]


def features_generator_forward(inp_img, filters, *, patch_size, patch_stride,
                               pool_size, pool_stride,
                               patch_mean=0.0, patch_std=1.0,
                               tb=16, compute_dtype=jnp.bfloat16):
    """Single-image forward matching FeaturesGenerator.forward()."""
    out = features_generator_forward_batched(
        inp_img[None], filters, patch_size=patch_size, patch_stride=patch_stride,
        pool_size=pool_size, pool_stride=pool_stride,
        patch_mean=patch_mean, patch_std=patch_std,
        tb=tb, compute_dtype=compute_dtype)
    return out[0]


# ---------------------------------------------------------------------------
# Pure-JAX reference (mirrors the PyTorch module semantics, f32 HIGHEST)
# ---------------------------------------------------------------------------
def reference_forward(inp_img, filters, *, patch_size, patch_stride,
                      pool_size, pool_stride, patch_mean, patch_std):
    img = jnp.asarray(inp_img, jnp.float32)
    h, w = img.shape
    xs = (h - patch_size) // patch_stride + 1
    ys = (w - patch_size) // patch_stride + 1
    rows = []
    for i in range(xs):
        for j in range(ys):
            rows.append(lax.dynamic_slice(
                img, (i * patch_stride, j * patch_stride),
                (patch_size, patch_size)).reshape(-1))
    patches = jnp.stack(rows, axis=0)                                  # (P, K)
    acts = jnp.maximum(
        jnp.dot((patches - patch_mean) / patch_std,
                jnp.asarray(filters, jnp.float32).T,
                precision=lax.Precision.HIGHEST), 0.0)                 # (P, C)
    acts = jnp.transpose(acts.reshape(xs, ys, -1), (2, 0, 1))          # (C, xs, ys)
    out_h = (xs - pool_size) // pool_stride + 1
    out_w = (ys - pool_size) // pool_stride + 1
    prow = []
    for i in range(out_h):
        pcol = []
        for j in range(out_w):
            win = acts[:, i * pool_stride:i * pool_stride + pool_size,
                          j * pool_stride:j * pool_stride + pool_size]
            pcol.append(jnp.mean(win, axis=(1, 2)))
        prow.append(jnp.stack(pcol, axis=-1))
    pooled = jnp.stack(prow, axis=-2)                                  # (C, out_h, out_w)
    return pooled.reshape(-1)


# ---------------------------------------------------------------------------
if __name__ == "__main__":
    # 16x16 image, 4x4 patches stride 2 -> 7x7 patch grid (P=49, K=16);
    # 8 filters; AvgPool2d(kernel=2, stride=2) -> 3x3 pooled grid (out_hw=9).
    data_size, patch_size, patch_stride = 16, 4, 2
    pool_size, pool_stride = 2, 2
    n_filters = 8
    patch_mean, patch_std = 0.5, 2.0
    common = dict(patch_size=patch_size, patch_stride=patch_stride,
                  pool_size=pool_size, pool_stride=pool_stride,
                  patch_mean=patch_mean, patch_std=patch_std)

    key = jax.random.PRNGKey(0)
    k_img, k_filt, k_batch = jax.random.split(key, 3)
    inp_img = jax.random.normal(k_img, (data_size, data_size), dtype=jnp.float32)
    filters = jax.random.normal(k_filt, (n_filters, patch_size * patch_size),
                                dtype=jnp.float32)

    ref = reference_forward(inp_img, filters, **common)

    # --- structural check: f32 compute path, tight tolerance ----------------
    out_f32 = features_generator_forward(
        inp_img, filters, compute_dtype=jnp.float32, **common)
    out_f32 = jax.block_until_ready(out_f32)
    assert out_f32.shape == (n_filters * 3 * 3,), out_f32.shape
    assert jnp.allclose(out_f32, ref, atol=1e-4, rtol=1e-4), "f32 path mismatch"

    # --- perf path: bf16 MXU operands, f32 accumulation ---------------------
    # bf16 operand rounding is ~2^-8 relative per operand; structural bugs
    # would show up as O(1) errors, so a 1e-1 tolerance still catches them.
    out = features_generator_forward(inp_img, filters, **common)
    out = jax.block_until_ready(out)
    assert out.shape == (n_filters * 3 * 3,), out.shape
    assert jnp.allclose(out, ref, atol=1e-1, rtol=1e-1), "single-image mismatch"

    # --- batched path (batch folded into lanes inside one grid step) --------
    batch = 4
    imgs = jax.random.normal(k_batch, (batch, data_size, data_size),
                             dtype=jnp.float32)
    out_b = features_generator_forward_batched(imgs, filters, **common)
    out_b = jax.block_until_ready(out_b)

    ref_b = jnp.stack([reference_forward(imgs[b], filters, **common)
                       for b in range(batch)])
    assert out_b.shape == (batch, n_filters * 3 * 3), out_b.shape
    assert jnp.allclose(out_b, ref_b, atol=1e-1, rtol=1e-1), "batched mismatch"

    print("KERNEL_OK")
</pallas_src>

<mosaic_0001>
module attributes {stable_mosaic.version = 11 : i64} {
  func.func @features_kernel(%arg0: i32, %arg1: memref<1x17x784xf32, #tpu.memory_space<vmem>>, %arg2: memref<8x17xf32, #tpu.memory_space<vmem>>, %arg3: memref<784x144xf32, #tpu.memory_space<vmem>>, %arg4: memref<1x8x144xf32, #tpu.memory_space<vmem>>) attributes {dimension_semantics = [#tpu.dimension_semantics<parallel>], iteration_bounds = array<i64: 1>, scalar_prefetch = 0 : i64, scratch_operands = 0 : i64, tpu.core_type = #tpu.core_type<tc>, window_params = [{transform_indices = @transform_0, window_bounds = array<i64: 1, 17, 784>}, {pipeline_mode = #tpu.pipeline_mode<synchronous>, transform_indices = @transform_1, window_bounds = array<i64: 8, 17>}, {pipeline_mode = #tpu.pipeline_mode<synchronous>, transform_indices = @transform_2, window_bounds = array<i64: 784, 144>}, {transform_indices = @transform_3, window_bounds = array<i64: 1, 8, 144>}]} {
    %c0 = arith.constant 0 : index
    %c0_0 = arith.constant 0 : index
    %0 = vector.load %arg2[%c0, %c0_0] : memref<8x17xf32, #tpu.memory_space<vmem>>, vector<8x17xf32>
    %c0_1 = arith.constant 0 : index
    %c0_2 = arith.constant 0 : index
    %c0_3 = arith.constant 0 : index
    %1 = vector.load %arg1[%c0_1, %c0_2, %c0_3] : memref<1x17x784xf32, #tpu.memory_space<vmem>>, vector<1x17x784xf32>
    %2 = vector.shape_cast %1 : vector<1x17x784xf32> to vector<17x784xf32>
    %cst = arith.constant dense<0.000000e+00> : vector<8x784xf32>
    %3 = tpu.matmul %0, %2, %cst {dimension_numbers = #tpu.dot_dimension_numbers<[1], [0], [0], [1], [0, 0, 1, 1], [], []>} : vector<8x17xf32>, vector<17x784xf32>, vector<8x784xf32> -> vector<8x784xf32>
    %cst_4 = arith.constant 0.000000e+00 : f32
    %4 = vector.broadcast %cst_4 : f32 to vector<8x784xf32>
    %5 = arith.maximumf %3, %4 : vector<8x784xf32>
    %c0_5 = arith.constant 0 : index
    %c0_6 = arith.constant 0 : index
    %6 = vector.load %arg3[%c0_5, %c0_6] : memref<784x144xf32, #tpu.memory_space<vmem>>, vector<784x144xf32>
    %cst_7 = arith.constant dense<0.000000e+00> : vector<8x144xf32>
    %7 = tpu.matmul %5, %6, %cst_7 {dimension_numbers = #tpu.dot_dimension_numbers<[1], [0], [0], [1], [0, 0, 1, 1], [], []>} : vector<8x784xf32>, vector<784x144xf32>, vector<8x144xf32> -> vector<8x144xf32>
    %c0_8 = arith.constant 0 : index
    %c0_9 = arith.constant 0 : index
    %c0_10 = arith.constant 0 : index
    %8 = vector.load %arg4[%c0_8, %c0_9, %c0_10] : memref<1x8x144xf32, #tpu.memory_space<vmem>>, vector<1x8x144xf32>
    %9 = vector.shape_cast %8 : vector<1x8x144xf32> to vector<8x144xf32>
    %10 = vector.shape_cast %7 : vector<8x144xf32> to vector<1x8x144xf32>
    tpu.vector_store %arg4[%c0_8, %c0_9, %c0_10], %10 {strides = array<i32>} : memref<1x8x144xf32, #tpu.memory_space<vmem>>, vector<1x8x144xf32>,
    return
  }
  func.func @transform_0(%arg0: i32) -> (i32, i32, i32) {
    %c0_i32 = arith.constant 0 : i32
    %c0_i32_0 = arith.constant 0 : i32
    %c0_i32_1 = arith.constant 0 : i32
    return %arg0, %c0_i32, %c0_i32_0 : i32, i32, i32
  }
  func.func @transform_1(%arg0: i32) -> (i32, i32) {
    %c0_i32 = arith.constant 0 : i32
    %c0_i32_0 = arith.constant 0 : i32
    %c0_i32_1 = arith.constant 0 : i32
    return %c0_i32, %c0_i32_0 : i32, i32
  }
  func.func @transform_2(%arg0: i32) -> (i32, i32) {
    %c0_i32 = arith.constant 0 : i32
    %c0_i32_0 = arith.constant 0 : i32
    %c0_i32_1 = arith.constant 0 : i32
    return %c0_i32, %c0_i32_0 : i32, i32
  }
  func.func @transform_3(%arg0: i32) -> (i32, i32, i32) {
    %c0_i32 = arith.constant 0 : i32
    %c0_i32_0 = arith.constant 0 : i32
    %c0_i32_1 = arith.constant 0 : i32
    return %arg0, %c0_i32, %c0_i32_0 : i32, i32, i32
  }
}

</mosaic_0001>

<llo_original>
// kernel: features_generator_forward_batched.1
$region0: #{features_generator_forward_batched.1}
  #allocation0 [shape = 'u32[]', space=smem, size = 0x4, offset = 0x4, fixed_abs, tag = 'smem constant byte address 0x4 - core index']
  #allocation1 [shape = 'u32[144,128]{1,0:T(1,128)}', space=vmem, size = 0x12000, scoped, tag = 'internal scratch']
  %s0 = inlined_call_operand.vmem [shape: f32[1,17,784], index: 0, kind: input, shape index: {}]
  %s1 = inlined_call_operand.vmem [shape: f32[8,17], index: 1, kind: input, shape index: {}]
  %s2 = inlined_call_operand.vmem [shape: f32[784,144], index: 2, kind: input, shape index: {}]
  %s3 = inlined_call_operand.vmem [shape: f32[1,8,144], index: 3, kind: output, shape index: {}]
  %s4 = sld [smem:[#allocation0]]
  $region22: #{features_generator_forward_batched.1} parent=0
    _
  %s6 = ssub.s32 1, %s4
  %s7 = scalar_select 0, %s6, %s4
  // Predicated region
  $region2: #{features_generator_forward_batched.1} parent=0 // pred_check
    _
  $region3: #{features_generator_forward_batched.1} parent=0 // pred_check_branch
    %9 = sbr.rel (0) target = $region5
  $region4: #{features_generator_forward_batched.1} parent=0 // pred_region
    _
  $region5: #{features_generator_forward_batched.1} parent=0 // pred_fallthru
    _
  // Predicated region
  $region6: #{features_generator_forward_batched.1} parent=0 // pred_check
    _
  $region7: #{features_generator_forward_batched.1} parent=0 // pred_check_branch
    %11 = sbr.rel (0) target = $region9
  $region8: #{features_generator_forward_batched.1} parent=0 // pred_region
    _
  $region9: #{features_generator_forward_batched.1} parent=0 // pred_fallthru
    _
  // Predicated region
  $region10: #{features_generator_forward_batched.1} parent=0 // pred_check
    _
  $region11: #{features_generator_forward_batched.1} parent=0 // pred_check_branch
    %13 = sbr.rel (0) target = $region13
  $region12: #{features_generator_forward_batched.1} parent=0 // pred_region
    _
  $region13: #{features_generator_forward_batched.1} parent=0 // pred_fallthru
    _
  %v14 = vld [vmem:[%s1] sm:$0xff]
  %v15 = vld [vmem:[%s0] sm:$0xff]
  %v16 = vld [vmem:[%s0 + $0x8] sm:$0xff]
  %v17 = vld [vmem:[%s0 + $0x10] sm:$0xff]
  %v18 = vld [vmem:[%s0 + $0x18] sm:$0xff]
  %v19 = vld [vmem:[%s0 + $0x20] sm:$0xff]
  %v20 = vld [vmem:[%s0 + $0x28] sm:$0xff]
  %v21 = vld [vmem:[%s0 + $0x30] sm:$0xff]
  %v22 = vld [vmem:[%s0 + $0x38] sm:$0xff]
  %v23 = vld [vmem:[%s0 + $0x40] sm:$0xff]
  %v24 = vld [vmem:[%s0 + $0x48] sm:$0xff]
  %v25 = vld [vmem:[%s0 + $0x50] sm:$0xff]
  %v26 = vld [vmem:[%s0 + $0x58] sm:$0xff]
  %v27 = vld [vmem:[%s0 + $0x60] sm:$0xff]
  %v28 = vld [vmem:[%s0 + $0x68] sm:$0xff]
  %v29 = vld [vmem:[%s0 + $0x70] sm:$0x1]
  %v30 = vld [vmem:[%s0 + $0x78] sm:$0x1]
  %v31 = vld [vmem:[%s0 + $0x80] sm:$0x1]
  %v32 = vld [vmem:[%s0 + $0x88] sm:$0x1]
  %v33 = vld [vmem:[%s0 + $0x90] sm:$0x1]
  %v34 = vld [vmem:[%s0 + $0x98] sm:$0x1]
  %v35 = vld [vmem:[%s0 + $0xa0] sm:$0x1]
  %vm36 = vcmask 138240
  %v38 = vsel %vm36, %v14, 0
  %vm40 = vcmask 1040384
  %v42 = vsel %vm40, %v29, 0
  %v45 = vsel %vm40, %v30, 0
  %v48 = vsel %vm40, %v31, 0
  %v51 = vsel %vm40, %v32, 0
  %v54 = vsel %vm40, %v33, 0
  %v57 = vsel %vm40, %v34, 0
  %v60 = vsel %vm40, %v35, 0
  %62 = vmatprep.subr.mxu0 %v16
  %63 = vmatpush1.msra.mxu0 %v15
  %64 = vmatprep.subr.mxu0 %v23
  %65 = vmatpush1.msra.mxu0 %v22
  %66 = vmatprep.subr.mxu0 %v45
  %67 = vmatpush1.msra.mxu0 %v42
  %68 = vmatprep.subr.mxu0 0.0
  %69 = vmatpush1.msra.mxu0 0.0
  %70 = vmatprep.subr.mxu0 0.0
  %71 = vmatpush1.msra.mxu0 0.0
  %72 = vmatprep.subr.mxu0 0.0
  %73 = vmatpush1.msra.mxu0 0.0
  %74 = vmatprep.subr.mxu0 0.0
  %75 = vmatpush1.msra.mxu0 0.0
  %76 = vmatprep.subr.mxu0 0.0
  %77 = vmatpush1.msra.mxu0 0.0
  %78 = vmatprep.subr.mxu0 0.0
  %79 = vmatpush1.msra.mxu0 0.0
  %80 = vmatprep.subr.mxu0 0.0
  %81 = vmatpush1.msra.mxu0 0.0
  %82 = vmatprep.subr.mxu0 0.0
  %83 = vmatpush1.msra.mxu0 0.0
  %84 = vmatprep.subr.mxu0 0.0
  %85 = vmatpush1.msra.mxu0 0.0
  %86 = vmatprep.subr.mxu0 0.0
  %87 = vmatpush1.msra.mxu0 0.0
  %88 = vmatprep.subr.mxu0 0.0
  %89 = vmatpush1.msra.mxu0 0.0
  %90 = vmatprep.subr.mxu0 0.0
  %91 = vmatpush1.msra.mxu0 0.0
  %92 = vmatprep.subr.mxu0 0.0
  %93 = vmatpush1.msra.mxu0 0.0
  %94 = vmatprep.subr.mxu0 0.0
  %95 = vmatpush1.msra.mxu0 0.0
  %96 = vmatprep.subr.mxu0 0.0
  %97 = vmatpush1.msra.mxu0 0.0
  %98 = vmatprep.subr.mxu0 0.0
  %99 = vmatpush1.msra.mxu0 0.0
  %100 = vmatprep.subr.mxu0 0.0
  %101 = vmatpush1.msra.mxu0 0.0
  %102 = vmatprep.subr.mxu0 0.0
  %103 = vmatpush1.msra.mxu0 0.0
  %104 = vmatprep.subr.mxu0 0.0
  %105 = vmatpush1.msra.mxu0 0.0
  %106 = vmatprep.subr.mxu0 0.0
  %107 = vmatpush1.msra.mxu0 0.0
  %108 = vmatprep.subr.mxu0 0.0
  %109 = vmatpush1.msra.mxu0 0.0
  %110 = vmatprep.subr.mxu0 0.0
  %111 = vmatpush1.msra.mxu0 0.0
  %112 = vmatprep.subr.mxu0 0.0
  %113 = vmatpush1.msra.mxu0 0.0
  %114 = vmatprep.subr.mxu0 0.0
  %115 = vmatpush1.msra.mxu0 0.0
  %116 = vmatprep.subr.mxu0 0.0
  %117 = vmatpush1.msra.mxu0 0.0
  %118 = vmatprep.subr.mxu0 0.0
  %119 = vmatpush1.msra.mxu0 0.0
  %120 = vmatprep.subr.mxu0 0.0
  %121 = vmatpush1.msra.mxu0 0.0
  %122 = vmatprep.subr.mxu0 0.0
  %123 = vmatpush1.msra.mxu0 0.0
  %124 = vmatprep.subr.mxu0 0.0
  %125 = vmatpush1.msra.mxu0 0.0
  %126 = vmatprep.mubr.f32.mxu0 0.0
  %127 = vmatmul.mubr.f32.gmra.mrb[0].mxu0 %v38
  %v128 = vpop.f32.mrb[0].mxu0
  %v129 = vadd.f32 0.0, %v128
  %v130 = vpop.f32.mrb[0].mxu0
  %v131 = vadd.f32 0.0, %v130
  %132 = vdwg.mxu0
  %133 = vmatprep.subr.mxu0 %v18
  %134 = vmatpush1.msra.mxu0 %v17
  %135 = vmatprep.subr.mxu0 %v25
  %136 = vmatpush1.msra.mxu0 %v24
  %137 = vmatprep.subr.mxu0 %v51
  %138 = vmatpush1.msra.mxu0 %v48
  %139 = vmatprep.subr.mxu0 0.0
  %140 = vmatpush1.msra.mxu0 0.0
  %141 = vmatprep.subr.mxu0 0.0
  %142 = vmatpush1.msra.mxu0 0.0
  %143 = vmatprep.subr.mxu0 0.0
  %144 = vmatpush1.msra.mxu0 0.0
  %145 = vmatprep.subr.mxu0 0.0
  %146 = vmatpush1.msra.mxu0 0.0
  %147 = vmatprep.subr.mxu0 0.0
  %148 = vmatpush1.msra.mxu0 0.0
  %149 = vmatprep.subr.mxu0 0.0
  %150 = vmatpush1.msra.mxu0 0.0
  %151 = vmatprep.subr.mxu0 0.0
  %152 = vmatpush1.msra.mxu0 0.0
  %153 = vmatprep.subr.mxu0 0.0
  %154 = vmatpush1.msra.mxu0 0.0
  %155 = vmatprep.subr.mxu0 0.0
  %156 = vmatpush1.msra.mxu0 0.0
  %157 = vmatprep.subr.mxu0 0.0
  %158 = vmatpush1.msra.mxu0 0.0
  %159 = vmatprep.subr.mxu0 0.0
  %160 = vmatpush1.msra.mxu0 0.0
  %161 = vmatprep.subr.mxu0 0.0
  %162 = vmatpush1.msra.mxu0 0.0
  %163 = vmatprep.subr.mxu0 0.0
  %164 = vmatpush1.msra.mxu0 0.0
  %165 = vmatprep.subr.mxu0 0.0
  %166 = vmatpush1.msra.mxu0 0.0
  %167 = vmatprep.subr.mxu0 0.0
  %168 = vmatpush1.msra.mxu0 0.0
  %169 = vmatprep.subr.mxu0 0.0
  %170 = vmatpush1.msra.mxu0 0.0
  %171 = vmatprep.subr.mxu0 0.0
  %172 = vmatpush1.msra.mxu0 0.0
  %173 = vmatprep.subr.mxu0 0.0
  %174 = vmatpush1.msra.mxu0 0.0
  %175 = vmatprep.subr.mxu0 0.0
  %176 = vmatpush1.msra.mxu0 0.0
  %177 = vmatprep.subr.mxu0 0.0
  %178 = vmatpush1.msra.mxu0 0.0
  %179 = vmatprep.subr.mxu0 0.0
  %180 = vmatpush1.msra.mxu0 0.0
  %181 = vmatprep.subr.mxu0 0.0
  %182 = vmatpush1.msra.mxu0 0.0
  %183 = vmatprep.subr.mxu0 0.0
  %184 = vmatpush1.msra.mxu0 0.0
  %185 = vmatprep.subr.mxu0 0.0
  %186 = vmatpush1.msra.mxu0 0.0
  %187 = vmatprep.subr.mxu0 0.0
  %188 = vmatpush1.msra.mxu0 0.0
  %189 = vmatprep.subr.mxu0 0.0
  %190 = vmatpush1.msra.mxu0 0.0
  %191 = vmatprep.subr.mxu0 0.0
  %192 = vmatpush1.msra.mxu0 0.0
  %193 = vmatprep.subr.mxu0 0.0
  %194 = vmatpush1.msra.mxu0 0.0
  %195 = vmatprep.subr.mxu0 0.0
  %196 = vmatpush1.msra.mxu0 0.0
  %197 = vmatprep.mubr.f32.mxu0 0.0
  %198 = vmatmul.mubr.f32.gmra.mrb[0].mxu0 %v38
  %v199 = vpop.f32.mrb[0].mxu0
  %v200 = vadd.f32 0.0, %v199
  %v201 = vpop.f32.mrb[0].mxu0
  %v202 = vadd.f32 0.0, %v201
  %203 = vdwg.mxu0
  %204 = vmatprep.subr.mxu0 %v20
  %205 = vmatpush1.msra.mxu0 %v19
  %206 = vmatprep.subr.mxu0 %v27
  %207 = vmatpush1.msra.mxu0 %v26
  %208 = vmatprep.subr.mxu0 %v57
  %209 = vmatpush1.msra.mxu0 %v54
  %210 = vmatprep.subr.mxu0 0.0
  %211 = vmatpush1.msra.mxu0 0.0
  %212 = vmatprep.subr.mxu0 0.0
  %213 = vmatpush1.msra.mxu0 0.0
  %214 = vmatprep.subr.mxu0 0.0
  %215 = vmatpush1.msra.mxu0 0.0
  %216 = vmatprep.subr.mxu0 0.0
  %217 = vmatpush1.msra.mxu0 0.0
  %218 = vmatprep.subr.mxu0 0.0
  %219 = vmatpush1.msra.mxu0 0.0
  %220 = vmatprep.subr.mxu0 0.0
  %221 = vmatpush1.msra.mxu0 0.0
  %222 = vmatprep.subr.mxu0 0.0
  %223 = vmatpush1.msra.mxu0 0.0
  %224 = vmatprep.subr.mxu0 0.0
  %225 = vmatpush1.msra.mxu0 0.0
  %226 = vmatprep.subr.mxu0 0.0
  %227 = vmatpush1.msra.mxu0 0.0
  %228 = vmatprep.subr.mxu0 0.0
  %229 = vmatpush1.msra.mxu0 0.0
  %230 = vmatprep.subr.mxu0 0.0
  %231 = vmatpush1.msra.mxu0 0.0
  %232 = vmatprep.subr.mxu0 0.0
  %233 = vmatpush1.msra.mxu0 0.0
  %234 = vmatprep.subr.mxu0 0.0
  %235 = vmatpush1.msra.mxu0 0.0
  %236 = vmatprep.subr.mxu0 0.0
  %237 = vmatpush1.msra.mxu0 0.0
  %238 = vmatprep.subr.mxu0 0.0
  %239 = vmatpush1.msra.mxu0 0.0
  %240 = vmatprep.subr.mxu0 0.0
  %241 = vmatpush1.msra.mxu0 0.0
  %242 = vmatprep.subr.mxu0 0.0
  %243 = vmatpush1.msra.mxu0 0.0
  %244 = vmatprep.subr.mxu0 0.0
  %245 = vmatpush1.msra.mxu0 0.0
  %246 = vmatprep.subr.mxu0 0.0
  %247 = vmatpush1.msra.mxu0 0.0
  %248 = vmatprep.subr.mxu0 0.0
  %249 = vmatpush1.msra.mxu0 0.0
  %250 = vmatprep.subr.mxu0 0.0
  %251 = vmatpush1.msra.mxu0 0.0
  %252 = vmatprep.subr.mxu0 0.0
  %253 = vmatpush1.msra.mxu0 0.0
  %254 = vmatprep.subr.mxu0 0.0
  %255 = vmatpush1.msra.mxu0 0.0
  %256 = vmatprep.subr.mxu0 0.0
  %257 = vmatpush1.msra.mxu0 0.0
  %258 = vmatprep.subr.mxu0 0.0
  %259 = vmatpush1.msra.mxu0 0.0
  %260 = vmatprep.subr.mxu0 0.0
  %261 = vmatpush1.msra.mxu0 0.0
  %262 = vmatprep.subr.mxu0 0.0
  %263 = vmatpush1.msra.mxu0 0.0
  %264 = vmatprep.subr.mxu0 0.0
  %265 = vmatpush1.msra.mxu0 0.0
  %266 = vmatprep.subr.mxu0 0.0
  %267 = vmatpush1.msra.mxu0 0.0
  %268 = vmatprep.mubr.f32.mxu0 0.0
  %269 = vmatmul.mubr.f32.gmra.mrb[0].mxu0 %v38
  %v270 = vpop.f32.mrb[0].mxu0
  %v271 = vadd.f32 0.0, %v270
  %v272 = vpop.f32.mrb[0].mxu0
  %v273 = vadd.f32 0.0, %v272
  %274 = vdwg.mxu0
  %275 = vmatprep.subr.mxu0 0.0
  %276 = vmatpush1.msra.mxu0 %v21
  %277 = vmatprep.subr.mxu0 0.0
  %278 = vmatpush1.msra.mxu0 %v28
  %279 = vmatprep.subr.mxu0 0.0
  %280 = vmatpush1.msra.mxu0 %v60
  %281 = vmatprep.subr.mxu0 0.0
  %282 = vmatpush1.msra.mxu0 0.0
  %283 = vmatprep.subr.mxu0 0.0
  %284 = vmatpush1.msra.mxu0 0.0
  %285 = vmatprep.subr.mxu0 0.0
  %286 = vmatpush1.msra.mxu0 0.0
  %287 = vmatprep.subr.mxu0 0.0
  %288 = vmatpush1.msra.mxu0 0.0
  %289 = vmatprep.subr.mxu0 0.0
  %290 = vmatpush1.msra.mxu0 0.0
  %291 = vmatprep.subr.mxu0 0.0
  %292 = vmatpush1.msra.mxu0 0.0
  %293 = vmatprep.subr.mxu0 0.0
  %294 = vmatpush1.msra.mxu0 0.0
  %295 = vmatprep.subr.mxu0 0.0
  %296 = vmatpush1.msra.mxu0 0.0
  %297 = vmatprep.subr.mxu0 0.0
  %298 = vmatpush1.msra.mxu0 0.0
  %299 = vmatprep.subr.mxu0 0.0
  %300 = vmatpush1.msra.mxu0 0.0
  %301 = vmatprep.subr.mxu0 0.0
  %302 = vmatpush1.msra.mxu0 0.0
  %303 = vmatprep.subr.mxu0 0.0
  %304 = vmatpush1.msra.mxu0 0.0
  %305 = vmatprep.subr.mxu0 0.0
  %306 = vmatpush1.msra.mxu0 0.0
  %307 = vmatprep.subr.mxu0 0.0
  %308 = vmatpush1.msra.mxu0 0.0
  %309 = vmatprep.subr.mxu0 0.0
  %310 = vmatpush1.msra.mxu0 0.0
  %311 = vmatprep.subr.mxu0 0.0
  %312 = vmatpush1.msra.mxu0 0.0
  %313 = vmatprep.subr.mxu0 0.0
  %314 = vmatpush1.msra.mxu0 0.0
  %315 = vmatprep.subr.mxu0 0.0
  %316 = vmatpush1.msra.mxu0 0.0
  %317 = vmatprep.subr.mxu0 0.0
  %318 = vmatpush1.msra.mxu0 0.0
  %319 = vmatprep.subr.mxu0 0.0
  %320 = vmatpush1.msra.mxu0 0.0
  %321 = vmatprep.subr.mxu0 0.0
  %322 = vmatpush1.msra.mxu0 0.0
  %323 = vmatprep.subr.mxu0 0.0
  %324 = vmatpush1.msra.mxu0 0.0
  %325 = vmatprep.subr.mxu0 0.0
  %326 = vmatpush1.msra.mxu0 0.0
  %327 = vmatprep.subr.mxu0 0.0
  %328 = vmatpush1.msra.mxu0 0.0
  %329 = vmatprep.subr.mxu0 0.0
  %330 = vmatpush1.msra.mxu0 0.0
  %331 = vmatprep.subr.mxu0 0.0
  %332 = vmatpush1.msra.mxu0 0.0
  %333 = vmatprep.subr.mxu0 0.0
  %334 = vmatpush1.msra.mxu0 0.0
  %335 = vmatprep.subr.mxu0 0.0
  %336 = vmatpush1.msra.mxu0 0.0
  %337 = vmatprep.subr.mxu0 0.0
  %338 = vmatpush1.msra.mxu0 0.0
  %339 = vmatprep.mubr.f32.mxu0 0.0
  %340 = vmatmul.mubr.f32.gmra.mrb[0].mxu0 %v38
  %v341 = vpop.f32.mrb[0].mxu0
  %v342 = vadd.f32 0.0, %v341
  %v343 = vpop.f32.mrb[0].mxu0
  %344 = vdwg.mxu0
  %v345 = vmax.f32 %v129, 0.0
  %v346 = vmax.f32 %v131, 0.0
  %v347 = vmax.f32 %v200, 0.0
  %v348 = vmax.f32 %v202, 0.0
  %v349 = vmax.f32 %v271, 0.0
  %v350 = vmax.f32 %v273, 0.0
  %v351 = vmax.f32 %v342, 0.0
  %v352 = vld [vmem:[%s2] sm:$0xff]
  %v353 = vld [vmem:[%s2 + $0x8] sm:$0xff]
  %v354 = vld [vmem:[%s2 + $0x10] sm:$0xff]
  %v355 = vld [vmem:[%s2 + $0x18] sm:$0xff]
  %v356 = vld [vmem:[%s2 + $0x20] sm:$0xff]
  %v357 = vld [vmem:[%s2 + $0x28] sm:$0xff]
  %v358 = vld [vmem:[%s2 + $0x30] sm:$0xff]
  %v359 = vld [vmem:[%s2 + $0x38] sm:$0xff]
  %v360 = vld [vmem:[%s2 + $0x40] sm:$0xff]
  %v361 = vld [vmem:[%s2 + $0x48] sm:$0xff]
  %v362 = vld [vmem:[%s2 + $0x50] sm:$0xff]
  %v363 = vld [vmem:[%s2 + $0x58] sm:$0xff]
  %v364 = vld [vmem:[%s2 + $0x60] sm:$0xff]
  %v365 = vld [vmem:[%s2 + $0x68] sm:$0xff]
  %v366 = vld [vmem:[%s2 + $0x70] sm:$0xff]
  %v367 = vld [vmem:[%s2 + $0x78] sm:$0xff]
  %v368 = vld [vmem:[%s2 + $0x80] sm:$0xff]
  %v369 = vld [vmem:[%s2 + $0x88] sm:$0xff]
  %v370 = vld [vmem:[%s2 + $0x90] sm:$0xff]
  %v371 = vld [vmem:[%s2 + $0x98] sm:$0xff]
  %v372 = vld [vmem:[%s2 + $0xa0] sm:$0xff]
  %v373 = vld [vmem:[%s2 + $0xa8] sm:$0xff]
  %v374 = vld [vmem:[%s2 + $0xb0] sm:$0xff]
  %v375 = vld [vmem:[%s2 + $0xb8] sm:$0xff]
  %v376 = vld [vmem:[%s2 + $0xc0] sm:$0xff]
  %v377 = vld [vmem:[%s2 + $0xc8] sm:$0xff]
  %v378 = vld [vmem:[%s2 + $0xd0] sm:$0xff]
  %v379 = vld [vmem:[%s2 + $0xd8] sm:$0xff]
  %v380 = vld [vmem:[%s2 + $0xe0] sm:$0xff]
  %v381 = vld [vmem:[%s2 + $0xe8] sm:$0xff]
  %v382 = vld [vmem:[%s2 + $0xf0] sm:$0xff]
  %v383 = vld [vmem:[%s2 + $0xf8] sm:$0xff]
  %v384 = vld [vmem:[%s2 + $0x100] sm:$0xff]
  %v385 = vld [vmem:[%s2 + $0x108] sm:$0xff]
  %v386 = vld [vmem:[%s2 + $0x110] sm:$0xff]
  %v387 = vld [vmem:[%s2 + $0x118] sm:$0xff]
  %v388 = vld [vmem:[%s2 + $0x120] sm:$0xff]
  %v389 = vld [vmem:[%s2 + $0x128] sm:$0xff]
  %v390 = vld [vmem:[%s2 + $0x130] sm:$0xff]
  %v391 = vld [vmem:[%s2 + $0x138] sm:$0xff]
  %v392 = vld [vmem:[%s2 + $0x140] sm:$0xff]
  %v393 = vld [vmem:[%s2 + $0x148] sm:$0xff]
  %v394 = vld [vmem:[%s2 + $0x150] sm:$0xff]
  %v395 = vld [vmem:[%s2 + $0x158] sm:$0xff]
  %v396 = vld [vmem:[%s2 + $0x160] sm:$0xff]
  %v397 = vld [vmem:[%s2 + $0x168] sm:$0xff]
  %v398 = vld [vmem:[%s2 + $0x170] sm:$0xff]
  %v399 = vld [vmem:[%s2 + $0x178] sm:$0xff]
  %v400 = vld [vmem:[%s2 + $0x180] sm:$0xff]
  %v401 = vld [vmem:[%s2 + $0x188] sm:$0xff]
  %v402 = vld [vmem:[%s2 + $0x190] sm:$0xff]
  %v403 = vld [vmem:[%s2 + $0x198] sm:$0xff]
  %v404 = vld [vmem:[%s2 + $0x1a0] sm:$0xff]
  %v405 = vld [vmem:[%s2 + $0x1a8] sm:$0xff]
  %v406 = vld [vmem:[%s2 + $0x1b0] sm:$0xff]
  %v407 = vld [vmem:[%s2 + $0x1b8] sm:$0xff]
  %v408 = vld [vmem:[%s2 + $0x1c0] sm:$0xff]
  %v409 = vld [vmem:[%s2 + $0x1c8] sm:$0xff]
  %v410 = vld [vmem:[%s2 + $0x1d0] sm:$0xff]
  %v411 = vld [vmem:[%s2 + $0x1d8] sm:$0xff]
  %v412 = vld [vmem:[%s2 + $0x1e0] sm:$0xff]
  %v413 = vld [vmem:[%s2 + $0x1e8] sm:$0xff]
  %v414 = vld [vmem:[%s2 + $0x1f0] sm:$0xff]
  %v415 = vld [vmem:[%s2 + $0x1f8] sm:$0xff]
  %v416 = vld [vmem:[%s2 + $0x200] sm:$0xff]
  %v417 = vld [vmem:[%s2 + $0x208] sm:$0xff]
  %v418 = vld [vmem:[%s2 + $0x210] sm:$0xff]
  %v419 = vld [vmem:[%s2 + $0x218] sm:$0xff]
  %v420 = vld [vmem:[%s2 + $0x220] sm:$0xff]
  %v421 = vld [vmem:[%s2 + $0x228] sm:$0xff]
  %v422 = vld [vmem:[%s2 + $0x230] sm:$0xff]
  %v423 = vld [vmem:[%s2 + $0x238] sm:$0xff]
  %v424 = vld [vmem:[%s2 + $0x240] sm:$0xff]
  %v425 = vld [vmem:[%s2 + $0x248] sm:$0xff]
  %v426 = vld [vmem:[%s2 + $0x250] sm:$0xff]
  %v427 = vld [vmem:[%s2 + $0x258] sm:$0xff]
  %v428 = vld [vmem:[%s2 + $0x260] sm:$0xff]
  %v429 = vld [vmem:[%s2 + $0x268] sm:$0xff]
  %v430 = vld [vmem:[%s2 + $0x270] sm:$0xff]
  %v431 = vld [vmem:[%s2 + $0x278] sm:$0xff]
  %v432 = vld [vmem:[%s2 + $0x280] sm:$0xff]
  %v433 = vld [vmem:[%s2 + $0x288] sm:$0xff]
  %v434 = vld [vmem:[%s2 + $0x290] sm:$0xff]
  %v435 = vld [vmem:[%s2 + $0x298] sm:$0xff]
  %v436 = vld [vmem:[%s2 + $0x2a0] sm:$0xff]
  %v437 = vld [vmem:[%s2 + $0x2a8] sm:$0xff]
  %v438 = vld [vmem:[%s2 + $0x2b0] sm:$0xff]
  %v439 = vld [vmem:[%s2 + $0x2b8] sm:$0xff]
  %v440 = vld [vmem:[%s2 + $0x2c0] sm:$0xff]
  %v441 = vld [vmem:[%s2 + $0x2c8] sm:$0xff]
  %v442 = vld [vmem:[%s2 + $0x2d0] sm:$0xff]
  %v443 = vld [vmem:[%s2 + $0x2d8] sm:$0xff]
  %v444 = vld [vmem:[%s2 + $0x2e0] sm:$0xff]
  %v445 = vld [vmem:[%s2 + $0x2e8] sm:$0xff]
  %v446 = vld [vmem:[%s2 + $0x2f0] sm:$0xff]
  %v447 = vld [vmem:[%s2 + $0x2f8] sm:$0xff]
  %v448 = vld [vmem:[%s2 + $0x300] sm:$0xff]
  %v449 = vld [vmem:[%s2 + $0x308] sm:$0xff]
  %v450 = vld [vmem:[%s2 + $0x310] sm:$0xff]
  %v451 = vld [vmem:[%s2 + $0x318] sm:$0xff]
  %v452 = vld [vmem:[%s2 + $0x320] sm:$0xff]
  %v453 = vld [vmem:[%s2 + $0x328] sm:$0xff]
  %v454 = vld [vmem:[%s2 + $0x330] sm:$0xff]
  %v455 = vld [vmem:[%s2 + $0x338] sm:$0xff]
  %v456 = vld [vmem:[%s2 + $0x340] sm:$0xff]
  %v457 = vld [vmem:[%s2 + $0x348] sm:$0xff]
  %v458 = vld [vmem:[%s2 + $0x350] sm:$0xff]
  %v459 = vld [vmem:[%s2 + $0x358] sm:$0xff]
  %v460 = vld [vmem:[%s2 + $0x360] sm:$0xff]
  %v461 = vld [vmem:[%s2 + $0x368] sm:$0xff]
  %v462 = vld [vmem:[%s2 + $0x370] sm:$0xff]
  %v463 = vld [vmem:[%s2 + $0x378] sm:$0xff]
  %v464 = vld [vmem:[%s2 + $0x380] sm:$0xff]
  %v465 = vld [vmem:[%s2 + $0x388] sm:$0xff]
  %v466 = vld [vmem:[%s2 + $0x390] sm:$0xff]
  %v467 = vld [vmem:[%s2 + $0x398] sm:$0xff]
  %v468 = vld [vmem:[%s2 + $0x3a0] sm:$0xff]
  %v469 = vld [vmem:[%s2 + $0x3a8] sm:$0xff]
  %v470 = vld [vmem:[%s2 + $0x3b0] sm:$0xff]
  %v471 = vld [vmem:[%s2 + $0x3b8] sm:$0xff]
  %v472 = vld [vmem:[%s2 + $0x3c0] sm:$0xff]
  %v473 = vld [vmem:[%s2 + $0x3c8] sm:$0xff]
  %v474 = vld [vmem:[%s2 + $0x3d0] sm:$0xff]
  %v475 = vld [vmem:[%s2 + $0x3d8] sm:$0xff]
  %v476 = vld [vmem:[%s2 + $0x3e0] sm:$0xff]
  %v477 = vld [vmem:[%s2 + $0x3e8] sm:$0xff]
  %v478 = vld [vmem:[%s2 + $0x3f0] sm:$0xff]
  %v479 = vld [vmem:[%s2 + $0x3f8] sm:$0xff]
  %v480 = vld [vmem:[%s2 + $0x400] sm:$0xff]
  %v481 = vld [vmem:[%s2 + $0x408] sm:$0xff]
  %v482 = vld [vmem:[%s2 + $0x410] sm:$0xff]
  %v483 = vld [vmem:[%s2 + $0x418] sm:$0xff]
  %v484 = vld [vmem:[%s2 + $0x420] sm:$0xff]
  %v485 = vld [vmem:[%s2 + $0x428] sm:$0xff]
  %v486 = vld [vmem:[%s2 + $0x430] sm:$0xff]
  %v487 = vld [vmem:[%s2 + $0x438] sm:$0xff]
  %v488 = vld [vmem:[%s2 + $0x440] sm:$0xff]
  %v489 = vld [vmem:[%s2 + $0x448] sm:$0xff]
  %v490 = vld [vmem:[%s2 + $0x450] sm:$0xff]
  %v491 = vld [vmem:[%s2 + $0x458] sm:$0xff]
  %v492 = vld [vmem:[%s2 + $0x460] sm:$0xff]
  %v493 = vld [vmem:[%s2 + $0x468] sm:$0xff]
  %v494 = vld [vmem:[%s2 + $0x470] sm:$0xff]
  %v495 = vld [vmem:[%s2 + $0x478] sm:$0xff]
  %v496 = vld [vmem:[%s2 + $0x480] sm:$0xff]
  %v497 = vld [vmem:[%s2 + $0x488] sm:$0xff]
  %v498 = vld [vmem:[%s2 + $0x490] sm:$0xff]
  %v499 = vld [vmem:[%s2 + $0x498] sm:$0xff]
  %v500 = vld [vmem:[%s2 + $0x4a0] sm:$0xff]
  %v501 = vld [vmem:[%s2 + $0x4a8] sm:$0xff]
  %v502 = vld [vmem:[%s2 + $0x4b0] sm:$0xff]
  %v503 = vld [vmem:[%s2 + $0x4b8] sm:$0xff]
  %v504 = vld [vmem:[%s2 + $0x4c0] sm:$0xff]
  %v505 = vld [vmem:[%s2 + $0x4c8] sm:$0xff]
  %v506 = vld [vmem:[%s2 + $0x4d0] sm:$0xff]
  %v507 = vld [vmem:[%s2 + $0x4d8] sm:$0xff]
  %v508 = vld [vmem:[%s2 + $0x4e0] sm:$0xff]
  %v509 = vld [vmem:[%s2 + $0x4e8] sm:$0xff]
  %v510 = vld [vmem:[%s2 + $0x4f0] sm:$0xff]
  %v511 = vld [vmem:[%s2 + $0x4f8] sm:$0xff]
  %v512 = vld [vmem:[%s2 + $0x500] sm:$0xff]
  %v513 = vld [vmem:[%s2 + $0x508] sm:$0xff]
  %v514 = vld [vmem:[%s2 + $0x510] sm:$0xff]
  %v515 = vld [vmem:[%s2 + $0x518] sm:$0xff]
  %v516 = vld [vmem:[%s2 + $0x520] sm:$0xff]
  %v517 = vld [vmem:[%s2 + $0x528] sm:$0xff]
  %v518 = vld [vmem:[%s2 + $0x530] sm:$0xff]
  %v519 = vld [vmem:[%s2 + $0x538] sm:$0xff]
  %v520 = vld [vmem:[%s2 + $0x540] sm:$0xff]
  %v521 = vld [vmem:[%s2 + $0x548] sm:$0xff]
  %v522 = vld [vmem:[%s2 + $0x550] sm:$0xff]
  %v523 = vld [vmem:[%s2 + $0x558] sm:$0xff]
  %v524 = vld [vmem:[%s2 + $0x560] sm:$0xff]
  %v525 = vld [vmem:[%s2 + $0x568] sm:$0xff]
  %v526 = vld [vmem:[%s2 + $0x570] sm:$0xff]
  %v527 = vld [vmem:[%s2 + $0x578] sm:$0xff]
  %v528 = vld [vmem:[%s2 + $0x580] sm:$0xff]
  %v529 = vld [vmem:[%s2 + $0x588] sm:$0xff]
  %v530 = vld [vmem:[%s2 + $0x590] sm:$0xff]
  %v531 = vld [vmem:[%s2 + $0x598] sm:$0xff]
  %v532 = vld [vmem:[%s2 + $0x5a0] sm:$0xff]
  %v533 = vld [vmem:[%s2 + $0x5a8] sm:$0xff]
  %v534 = vld [vmem:[%s2 + $0x5b0] sm:$0xff]
  %v535 = vld [vmem:[%s2 + $0x5b8] sm:$0xff]
  %v536 = vld [vmem:[%s2 + $0x5c0] sm:$0xff]
  %v537 = vld [vmem:[%s2 + $0x5c8] sm:$0xff]
  %v538 = vld [vmem:[%s2 + $0x5d0] sm:$0xff]
  %v539 = vld [vmem:[%s2 + $0x5d8] sm:$0xff]
  %v540 = vld [vmem:[%s2 + $0x5e0] sm:$0xff]
  %v541 = vld [vmem:[%s2 + $0x5e8] sm:$0xff]
  %v542 = vld [vmem:[%s2 + $0x5f0] sm:$0xff]
  %v543 = vld [vmem:[%s2 + $0x5f8] sm:$0xff]
  %v544 = vld [vmem:[%s2 + $0x600] sm:$0xff]
  %v545 = vld [vmem:[%s2 + $0x608] sm:$0xff]
  %v546 = vld [vmem:[%s2 + $0x610] sm:$0xff]
  %v547 = vld [vmem:[%s2 + $0x618] sm:$0xff]
  %vm548 = vcmask 130048
  %v550 = vsel %vm548, %v351, 0
  %552 = vmatprep.subr.mxu0 %v353
  %553 = vmatpush1.msra.mxu0 %v352
  %554 = vmatprep.subr.mxu0 %v355
  %555 = vmatpush1.msra.mxu0 %v354
  %556 = vmatprep.subr.mxu0 %v357
  %557 = vmatpush1.msra.mxu0 %v356
  %558 = vmatprep.subr.mxu0 %v359
  %559 = vmatpush1.msra.mxu0 %v358
  %560 = vmatprep.subr.mxu0 %v361
  %561 = vmatpush1.msra.mxu0 %v360
  %562 = vmatprep.subr.mxu0 %v363
  %563 = vmatpush1.msra.mxu0 %v362
  %564 = vmatprep.subr.mxu0 %v365
  %565 = vmatpush1.msra.mxu0 %v364
  %566 = vmatprep.subr.mxu0 %v367
  %567 = vmatpush1.msra.mxu0 %v366
  %568 = vmatprep.subr.mxu0 %v369
  %569 = vmatpush1.msra.mxu0 %v368
  %570 = vmatprep.subr.mxu0 %v371
  %571 = vmatpush1.msra.mxu0 %v370
  %572 = vmatprep.subr.mxu0 %v373
  %573 = vmatpush1.msra.mxu0 %v372
  %574 = vmatprep.subr.mxu0 %v375
  %575 = vmatpush1.msra.mxu0 %v374
  %576 = vmatprep.subr.mxu0 %v377
  %577 = vmatpush1.msra.mxu0 %v376
  %578 = vmatprep.subr.mxu0 %v379
  %579 = vmatpush1.msra.mxu0 %v378
  %580 = vmatprep.subr.mxu0 %v381
  %581 = vmatpush1.msra.mxu0 %v380
  %582 = vmatprep.subr.mxu0 %v383
  %583 = vmatpush1.msra.mxu0 %v382
  %584 = vmatprep.subr.mxu0 %v385
  %585 = vmatpush1.msra.mxu0 %v384
  %586 = vmatprep.subr.mxu0 %v387
  %587 = vmatpush1.msra.mxu0 %v386
  %588 = vmatprep.subr.mxu0 %v389
  %589 = vmatpush1.msra.mxu0 %v388
  %590 = vmatprep.subr.mxu0 %v391
  %591 = vmatpush1.msra.mxu0 %v390
  %592 = vmatprep.subr.mxu0 %v393
  %593 = vmatpush1.msra.mxu0 %v392
  %594 = vmatprep.subr.mxu0 %v395
  %595 = vmatpush1.msra.mxu0 %v394
  %596 = vmatprep.subr.mxu0 %v397
  %597 = vmatpush1.msra.mxu0 %v396
  %598 = vmatprep.subr.mxu0 %v399
  %599 = vmatpush1.msra.mxu0 %v398
  %600 = vmatprep.subr.mxu0 %v401
  %601 = vmatpush1.msra.mxu0 %v400
  %602 = vmatprep.subr.mxu0 %v403
  %603 = vmatpush1.msra.mxu0 %v402
  %604 = vmatprep.subr.mxu0 %v405
  %605 = vmatpush1.msra.mxu0 %v404
  %606 = vmatprep.subr.mxu0 %v407
  %607 = vmatpush1.msra.mxu0 %v406
  %608 = vmatprep.subr.mxu0 %v409
  %609 = vmatpush1.msra.mxu0 %v408
  %610 = vmatprep.subr.mxu0 %v411
  %611 = vmatpush1.msra.mxu0 %v410
  %612 = vmatprep.subr.mxu0 %v413
  %613 = vmatpush1.msra.mxu0 %v412
  %614 = vmatprep.subr.mxu0 %v415
  %615 = vmatpush1.msra.mxu0 %v414
  %616 = vmatprep.mubr.f32.mxu0 %v346
  %617 = vmatmul.mubr.f32.gmra.mrb[0].mxu0 %v345
  %v618 = vpop.f32.mrb[0].mxu0
  %v619 = vadd.f32 0.0, %v618
  %v620 = vpop.f32.mrb[0].mxu0
  %v621 = vadd.f32 0.0, %v620
  %622 = vdwg.mxu0
  %623 = vmatprep.subr.mxu0 %v417
  %624 = vmatpush1.msra.mxu0 %v416
  %625 = vmatprep.subr.mxu0 %v419
  %626 = vmatpush1.msra.mxu0 %v418
  %627 = vmatprep.subr.mxu0 %v421
  %628 = vmatpush1.msra.mxu0 %v420
  %629 = vmatprep.subr.mxu0 %v423
  %630 = vmatpush1.msra.mxu0 %v422
  %631 = vmatprep.subr.mxu0 %v425
  %632 = vmatpush1.msra.mxu0 %v424
  %633 = vmatprep.subr.mxu0 %v427
  %634 = vmatpush1.msra.mxu0 %v426
  %635 = vmatprep.subr.mxu0 %v429
  %636 = vmatpush1.msra.mxu0 %v428
  %637 = vmatprep.subr.mxu0 %v431
  %638 = vmatpush1.msra.mxu0 %v430
  %639 = vmatprep.subr.mxu0 %v433
  %640 = vmatpush1.msra.mxu0 %v432
  %641 = vmatprep.subr.mxu0 %v435
  %642 = vmatpush1.msra.mxu0 %v434
  %643 = vmatprep.subr.mxu0 %v437
  %644 = vmatpush1.msra.mxu0 %v436
  %645 = vmatprep.subr.mxu0 %v439
  %646 = vmatpush1.msra.mxu0 %v438
  %647 = vmatprep.subr.mxu0 %v441
  %648 = vmatpush1.msra.mxu0 %v440
  %649 = vmatprep.subr.mxu0 %v443
  %650 = vmatpush1.msra.mxu0 %v442
  %651 = vmatprep.subr.mxu0 %v445
  %652 = vmatpush1.msra.mxu0 %v444
  %653 = vmatprep.subr.mxu0 %v447
  %654 = vmatpush1.msra.mxu0 %v446
  %655 = vmatprep.subr.mxu0 %v449
  %656 = vmatpush1.msra.mxu0 %v448
  %657 = vmatprep.subr.mxu0 %v451
  %658 = vmatpush1.msra.mxu0 %v450
  %659 = vmatprep.subr.mxu0 %v453
  %660 = vmatpush1.msra.mxu0 %v452
  %661 = vmatprep.subr.mxu0 %v455
  %662 = vmatpush1.msra.mxu0 %v454
  %663 = vmatprep.subr.mxu0 %v457
  %664 = vmatpush1.msra.mxu0 %v456
  %665 = vmatprep.subr.mxu0 %v459
  %666 = vmatpush1.msra.mxu0 %v458
  %667 = vmatprep.subr.mxu0 %v461
  %668 = vmatpush1.msra.mxu0 %v460
  %669 = vmatprep.subr.mxu0 %v463
  %670 = vmatpush1.msra.mxu0 %v462
  %671 = vmatprep.subr.mxu0 %v465
  %672 = vmatpush1.msra.mxu0 %v464
  %673 = vmatprep.subr.mxu0 %v467
  %674 = vmatpush1.msra.mxu0 %v466
  %675 = vmatprep.subr.mxu0 %v469
  %676 = vmatpush1.msra.mxu0 %v468
  %677 = vmatprep.subr.mxu0 %v471
  %678 = vmatpush1.msra.mxu0 %v470
  %679 = vmatprep.subr.mxu0 %v473
  %680 = vmatpush1.msra.mxu0 %v472
  %681 = vmatprep.subr.mxu0 %v475
  %682 = vmatpush1.msra.mxu0 %v474
  %683 = vmatprep.subr.mxu0 %v477
  %684 = vmatpush1.msra.mxu0 %v476
  %685 = vmatprep.subr.mxu0 %v479
  %686 = vmatpush1.msra.mxu0 %v478
  %687 = vmatprep.mubr.f32.mxu0 %v348
  %688 = vmatmul.mubr.f32.gmra.mrb[0].mxu0 %v347
  %v689 = vpop.f32.mrb[0].mxu0
  %v690 = vadd.f32 %v619, %v689
  %v691 = vpop.f32.mrb[0].mxu0
  %v692 = vadd.f32 %v621, %v691
  %693 = vdwg.mxu0
  %694 = vmatprep.subr.mxu0 %v481
  %695 = vmatpush1.msra.mxu0 %v480
  %696 = vmatprep.subr.mxu0 %v483
  %697 = vmatpush1.msra.mxu0 %v482
  %698 = vmatprep.subr.mxu0 %v485
  %699 = vmatpush1.msra.mxu0 %v484
  %700 = vmatprep.subr.mxu0 %v487
  %701 = vmatpush1.msra.mxu0 %v486
  %702 = vmatprep.subr.mxu0 %v489
  %703 = vmatpush1.msra.mxu0 %v488
  %704 = vmatprep.subr.mxu0 %v491
  %705 = vmatpush1.msra.mxu0 %v490
  %706 = vmatprep.subr.mxu0 %v493
  %707 = vmatpush1.msra.mxu0 %v492
  %708 = vmatprep.subr.mxu0 %v495
  %709 = vmatpush1.msra.mxu0 %v494
  %710 = vmatprep.subr.mxu0 %v497
  %711 = vmatpush1.msra.mxu0 %v496
  %712 = vmatprep.subr.mxu0 %v499
  %713 = vmatpush1.msra.mxu0 %v498
  %714 = vmatprep.subr.mxu0 %v501
  %715 = vmatpush1.msra.mxu0 %v500
  %716 = vmatprep.subr.mxu0 %v503
  %717 = vmatpush1.msra.mxu0 %v502
  %718 = vmatprep.subr.mxu0 %v505
  %719 = vmatpush1.msra.mxu0 %v504
  %720 = vmatprep.subr.mxu0 %v507
  %721 = vmatpush1.msra.mxu0 %v506
  %722 = vmatprep.subr.mxu0 %v509
  %723 = vmatpush1.msra.mxu0 %v508
  %724 = vmatprep.subr.mxu0 %v511
  %725 = vmatpush1.msra.mxu0 %v510
  %726 = vmatprep.subr.mxu0 %v513
  %727 = vmatpush1.msra.mxu0 %v512
  %728 = vmatprep.subr.mxu0 %v515
  %729 = vmatpush1.msra.mxu0 %v514
  %730 = vmatprep.subr.mxu0 %v517
  %731 = vmatpush1.msra.mxu0 %v516
  %732 = vmatprep.subr.mxu0 %v519
  %733 = vmatpush1.msra.mxu0 %v518
  %734 = vmatprep.subr.mxu0 %v521
  %735 = vmatpush1.msra.mxu0 %v520
  %736 = vmatprep.subr.mxu0 %v523
  %737 = vmatpush1.msra.mxu0 %v522
  %738 = vmatprep.subr.mxu0 %v525
  %739 = vmatpush1.msra.mxu0 %v524
  %740 = vmatprep.subr.mxu0 %v527
  %741 = vmatpush1.msra.mxu0 %v526
  %742 = vmatprep.subr.mxu0 %v529
  %743 = vmatpush1.msra.mxu0 %v528
  %744 = vmatprep.subr.mxu0 %v531
  %745 = vmatpush1.msra.mxu0 %v530
  %746 = vmatprep.subr.mxu0 %v533
  %747 = vmatpush1.msra.mxu0 %v532
  %748 = vmatprep.subr.mxu0 %v535
  %749 = vmatpush1.msra.mxu0 %v534
  %750 = vmatprep.subr.mxu0 %v537
  %751 = vmatpush1.msra.mxu0 %v536
  %752 = vmatprep.subr.mxu0 %v539
  %753 = vmatpush1.msra.mxu0 %v538
  %754 = vmatprep.subr.mxu0 %v541
  %755 = vmatpush1.msra.mxu0 %v540
  %756 = vmatprep.subr.mxu0 %v543
  %757 = vmatpush1.msra.mxu0 %v542
  %758 = vmatprep.mubr.f32.mxu0 %v350
  %759 = vmatmul.mubr.f32.gmra.mrb[0].mxu0 %v349
  %v760 = vpop.f32.mrb[0].mxu0
  %v761 = vadd.f32 %v690, %v760
  %v762 = vpop.f32.mrb[0].mxu0
  %v763 = vadd.f32 %v692, %v762
  %764 = vdwg.mxu0
  %765 = vmatprep.subr.mxu0 %v545
  %766 = vmatpush1.msra.mxu0 %v544
  %767 = vmatprep.subr.mxu0 %v547
  %768 = vmatpush1.msra.mxu0 %v546
  %769 = vmatprep.subr.mxu0 0.0
  %770 = vmatpush1.msra.mxu0 0.0
  %771 = vmatprep.subr.mxu0 0.0
  %772 = vmatpush1.msra.mxu0 0.0
  %773 = vmatprep.subr.mxu0 0.0
  %774 = vmatpush1.msra.mxu0 0.0
  %775 = vmatprep.subr.mxu0 0.0
  %776 = vmatpush1.msra.mxu0 0.0
  %777 = vmatprep.subr.mxu0 0.0
  %778 = vmatpush1.msra.mxu0 0.0
  %779 = vmatprep.subr.mxu0 0.0
  %780 = vmatpush1.msra.mxu0 0.0
  %781 = vmatprep.subr.mxu0 0.0
  %782 = vmatpush1.msra.mxu0 0.0
  %783 = vmatprep.subr.mxu0 0.0
  %784 = vmatpush1.msra.mxu0 0.0
  %785 = vmatprep.subr.mxu0 0.0
  %786 = vmatpush1.msra.mxu0 0.0
  %787 = vmatprep.subr.mxu0 0.0
  %788 = vmatpush1.msra.mxu0 0.0
  %789 = vmatprep.subr.mxu0 0.0
  %790 = vmatpush1.msra.mxu0 0.0
  %791 = vmatprep.subr.mxu0 0.0
  %792 = vmatpush1.msra.mxu0 0.0
  %793 = vmatprep.subr.mxu0 0.0
  %794 = vmatpush1.msra.mxu0 0.0
  %795 = vmatprep.subr.mxu0 0.0
  %796 = vmatpush1.msra.mxu0 0.0
  %797 = vmatprep.subr.mxu0 0.0
  %798 = vmatpush1.msra.mxu0 0.0
  %799 = vmatprep.subr.mxu0 0.0
  %800 = vmatpush1.msra.mxu0 0.0
  %801 = vmatprep.subr.mxu0 0.0
  %802 = vmatpush1.msra.mxu0 0.0
  %803 = vmatprep.subr.mxu0 0.0
  %804 = vmatpush1.msra.mxu0 0.0
  %805 = vmatprep.subr.mxu0 0.0
  %806 = vmatpush1.msra.mxu0 0.0
  %807 = vmatprep.subr.mxu0 0.0
  %808 = vmatpush1.msra.mxu0 0.0
  %809 = vmatprep.subr.mxu0 0.0
  %810 = vmatpush1.msra.mxu0 0.0
  %811 = vmatprep.subr.mxu0 0.0
  %812 = vmatpush1.msra.mxu0 0.0
  %813 = vmatprep.subr.mxu0 0.0
  %814 = vmatpush1.msra.mxu0 0.0
  %815 = vmatprep.subr.mxu0 0.0
  %816 = vmatpush1.msra.mxu0 0.0
  %817 = vmatprep.subr.mxu0 0.0
  %818 = vmatpush1.msra.mxu0 0.0
  %819 = vmatprep.subr.mxu0 0.0
  %820 = vmatpush1.msra.mxu0 0.0
  %821 = vmatprep.subr.mxu0 0.0
  %822 = vmatpush1.msra.mxu0 0.0
  %823 = vmatprep.subr.mxu0 0.0
  %824 = vmatpush1.msra.mxu0 0.0
  %825 = vmatprep.subr.mxu0 0.0
  %826 = vmatpush1.msra.mxu0 0.0
  %827 = vmatprep.subr.mxu0 0.0
  %828 = vmatpush1.msra.mxu0 0.0
  %829 = vmatprep.mubr.f32.mxu0 0.0
  %830 = vmatmul.mubr.f32.gmra.mrb[0].mxu0 %v550
  %v831 = vpop.f32.mrb[0].mxu0
  %v832 = vadd.f32 %v761, %v831
  %v833 = vpop.f32.mrb[0].mxu0
  %v834 = vadd.f32 %v763, %v833
  %835 = vdwg.mxu0
  %836 = vst [vmem:[%s3] sm:$0xff] %v832
  %837 = vst.msk [vmem:[%s3 + $0x8] sm:$0xff] %vm548, %v834
  // Predicated region
  $region14: #{features_generator_forward_batched.1} parent=0 // pred_check
    _
  $region15: #{features_generator_forward_batched.1} parent=0 // pred_check_branch
    %839 = sbr.rel (0) target = $region17
  $region16: #{features_generator_forward_batched.1} parent=0 // pred_region
    _
  $region17: #{features_generator_forward_batched.1} parent=0 // pred_fallthru
    _
  // Predicated region
  $region18: #{features_generator_forward_batched.1} parent=0 // pred_check
    _
  $region19: #{features_generator_forward_batched.1} parent=0 // pred_check_branch
    %841 = sbr.rel (0) target = $region21
  $region20: #{features_generator_forward_batched.1} parent=0 // pred_region
    _
  $region21: #{features_generator_forward_batched.1} parent=0 // pred_fallthru
    _

</llo_original>
